<compile_context>
chip_gen: v6e
topology: v6e:2x2x1
jax: 0.10.0
libtpu: 0.0.40
codegen_flags: <defaults>
</compile_context>

<pallas_src>
import functools

import jax
import jax.numpy as jnp
from jax.experimental import pallas as pl
from jax.experimental.pallas import tpu as pltpu

LN_EPS = 1e-5


def _choose_row_tile(n, max_tile=256):
    """Largest row tile <= max_tile; small N rounds up to the sublane granule."""
    if n >= max_tile:
        return max_tile
    return max(8, ((n + 7) // 8) * 8)


def res_layer_kernel(x_ref, w1_ref, w2_ref, vec_ref, o_ref, *, d_true, matmul_dtype):
    """One row-tile of: ReLU(LN(W2 @ ReLU(LN(W1 @ x + b1)) + b2)) + x.

    The lane dim may be padded to a multiple of 128; padded columns of x /
    weights / biases / gammas are zero, so LN stats over the true `d_true`
    columns are recovered with plain lane sums plus a lane mask.
    """
    x = x_ref[...]                                   # [R, Dp] f32
    vec = vec_ref[...].astype(jnp.float32)           # [8, Dp]
    b1, g1, be1 = vec[0:1], vec[1:2], vec[2:3]
    b2, g2, be2 = vec[3:4], vec[4:5], vec[5:6]

    d_pad = x.shape[-1]
    lane = jax.lax.broadcasted_iota(jnp.int32, (1, d_pad), 1)
    lane_mask = (lane < d_true).astype(jnp.float32)  # [1, Dp]
    inv_d = 1.0 / d_true

    def layer_norm(h, gamma, beta):
        # Padded lanes of h are exactly 0, so lane sums == sums over true D.
        mu = jnp.sum(h, axis=-1, keepdims=True) * inv_d
        centered = (h - mu) * lane_mask
        var = jnp.sum(centered * centered, axis=-1, keepdims=True) * inv_d
        # gamma/beta are zero on padded lanes -> padded output stays exactly 0.
        return centered * jax.lax.rsqrt(var + LN_EPS) * gamma + beta

    # Linear1 -> LayerNorm1 -> ReLU   (bf16 MXU inputs, f32 accumulate)
    h = jnp.dot(x.astype(matmul_dtype), w1_ref[...],
                preferred_element_type=jnp.float32) + b1
    h = jnp.maximum(layer_norm(h, g1, be1), 0.0)

    # Linear2 -> LayerNorm2 -> ReLU
    h = jnp.dot(h.astype(matmul_dtype), w2_ref[...],
                preferred_element_type=jnp.float32) + b2
    h = jnp.maximum(layer_norm(h, g2, be2), 0.0)

    # Residual (x is already resident in VMEM for this tile).
    o_ref[...] = (h + x).astype(o_ref.dtype)


def res_layer_with_norm(x, params, *, max_row_tile=256, matmul_dtype=jnp.bfloat16):
    """x: [N, D] float32.  params: w1,b1,g1,beta1,w2,b2,g2,beta2 (w as [in,out])."""
    N, D = x.shape

    # ---- lane-dense padding of the hidden dim (multiple of 128) ----
    Dp = ((max(D, 128) + 127) // 128) * 128
    row_tile = _choose_row_tile(N, max_row_tile)
    Np = ((N + row_tile - 1) // row_tile) * row_tile

    if (Np, Dp) == (N, D):
        xp = x
    else:
        xp = jnp.zeros((Np, Dp), x.dtype).at[:N, :D].set(x)

    def pad_w(w):
        w = jnp.asarray(w, jnp.float32)
        if Dp != D:
            w = jnp.zeros((Dp, Dp), jnp.float32).at[:D, :D].set(w)
        return w.astype(matmul_dtype)

    def pad_v(v):
        v = jnp.reshape(jnp.asarray(v, jnp.float32), (1, -1))
        if Dp != D:
            v = jnp.zeros((1, Dp), jnp.float32).at[:, :D].set(v)
        return v

    w1 = pad_w(params["w1"])
    w2 = pad_w(params["w2"])
    # Pack b1,g1,beta1,b2,g2,beta2 (+2 zero rows) into one (8, Dp) operand.
    vec = jnp.concatenate(
        [pad_v(params["b1"]), pad_v(params["g1"]), pad_v(params["beta1"]),
         pad_v(params["b2"]), pad_v(params["g2"]), pad_v(params["beta2"]),
         jnp.zeros((2, Dp), jnp.float32)], axis=0)

    grid = (Np // row_tile,)
    rows = lambda i: (i, 0)     # x / out: tiled along rows
    full = lambda i: (0, 0)     # weights / packed vectors: same block every step

    # ---- explicit VMEM budget (double-buffered tiles + headroom) ----
    w_itemsize = jnp.dtype(matmul_dtype).itemsize
    vmem_need = (2 * 2 * Dp * Dp * w_itemsize        # w1, w2 (x2 buffers each)
                 + 2 * 2 * row_tile * Dp * 4         # x, out (x2 buffers each)
                 + 2 * 8 * Dp * 4)                   # packed vectors
    # Clamp to 56 MiB so the scoped request fits v7x's 64 MiB per-TC VMEM.
    vmem_limit = int(min(max(int(vmem_need * 1.5) + (2 << 20), 32 * 1024 * 1024),
                         56 * 1024 * 1024))
    # TODO(synk): for D >~ 4K (weights no longer VMEM-resident, esp. v7x 64MiB),
    # add a K/N contraction grid axis with an accumulator instead of shrinking rows.

    kernel = functools.partial(res_layer_kernel, d_true=D, matmul_dtype=matmul_dtype)

    out = pl.pallas_call(
        kernel,
        out_shape=jax.ShapeDtypeStruct((Np, Dp), x.dtype),
        grid_spec=pltpu.PrefetchScalarGridSpec(
            num_scalar_prefetch=0,
            grid=grid,
            in_specs=[
                pl.BlockSpec((row_tile, Dp), rows),   # x
                pl.BlockSpec((Dp, Dp), full),         # w1 (bf16)
                pl.BlockSpec((Dp, Dp), full),         # w2 (bf16)
                pl.BlockSpec((8, Dp), full),          # packed b/gamma/beta
            ],
            out_specs=pl.BlockSpec((row_tile, Dp), rows),
        ),
        compiler_params=pltpu.CompilerParams(
            dimension_semantics=("parallel",),
            vmem_limit_bytes=vmem_limit),
    )(xp, w1, w2, vec)

    if (Np, Dp) == (N, D):
        return out
    return out[:N, :D]


def reference(x, p, matmul_dtype=jnp.float32):
    """Pure-JAX reference; matmul_dtype mirrors the kernel's MXU input dtype."""
    def ln(h, g, b):
        mu = jnp.mean(h, axis=-1, keepdims=True)
        var = jnp.mean((h - mu) ** 2, axis=-1, keepdims=True)
        return (h - mu) * jax.lax.rsqrt(var + LN_EPS) * g + b

    def mm(a, w):
        return jnp.dot(a.astype(matmul_dtype), w.astype(matmul_dtype),
                       preferred_element_type=jnp.float32)

    h = jnp.maximum(ln(mm(x, p["w1"]) + p["b1"], p["g1"], p["beta1"]), 0.0)
    h = jnp.maximum(ln(mm(h, p["w2"]) + p["b2"], p["g2"], p["beta2"]), 0.0)
    return h + x


def _make_params(key, D):
    k_w1, k_b1, k_w2, k_b2 = jax.random.split(key, 4)
    scale = 1.0 / jnp.sqrt(jnp.float32(D))
    return {
        # nn.Linear(in, out): weight [out, in] -> stored transposed [in, out]
        "w1": jax.random.uniform(k_w1, (D, D), jnp.float32, -scale, scale),
        "b1": jax.random.uniform(k_b1, (1, D), jnp.float32, -scale, scale),
        "g1": jnp.ones((1, D), jnp.float32),
        "beta1": jnp.zeros((1, D), jnp.float32),
        "w2": jax.random.uniform(k_w2, (D, D), jnp.float32, -scale, scale),
        "b2": jax.random.uniform(k_b2, (1, D), jnp.float32, -scale, scale),
        "g2": jnp.ones((1, D), jnp.float32),
        "beta2": jnp.zeros((1, D), jnp.float32),
    }


if __name__ == "__main__":
    key = jax.random.PRNGKey(0)

    # --- case 1: module-sized small shapes (batch=2, seq=8, hidden=32) ---
    batch, seq, hidden = 2, 8, 32
    N, D = batch * seq, hidden
    k_x, k_p, k_x2, k_p2 = jax.random.split(key, 4)
    x = jax.random.normal(k_x, (N, D), dtype=jnp.float32)
    params = _make_params(k_p, D)

    # f32 matmul path vs. pure-f32 reference (tight tolerance).
    out_f32 = jax.block_until_ready(
        res_layer_with_norm(x, params, matmul_dtype=jnp.float32))
    ref_f32 = reference(x, params, matmul_dtype=jnp.float32)
    assert out_f32.shape == (N, D)
    assert jnp.allclose(out_f32, ref_f32, atol=5e-4, rtol=5e-4), "f32 mismatch"

    # Default bf16 matmul path vs. reference using identically-cast matmul inputs.
    out_bf16 = jax.block_until_ready(res_layer_with_norm(x, params))
    ref_bf16 = reference(x, params, matmul_dtype=jnp.bfloat16)
    assert jnp.allclose(out_bf16, ref_bf16, atol=2e-3, rtol=2e-3), "bf16 mismatch"

    # --- case 2: lane-dense / multi-tile path (grid > 1, no padding needed) ---
    N2, D2 = 512, 128
    x2 = jax.random.normal(k_x2, (N2, D2), dtype=jnp.float32)
    params2 = _make_params(k_p2, D2)
    out2 = jax.block_until_ready(res_layer_with_norm(x2, params2))
    ref2 = reference(x2, params2, matmul_dtype=jnp.bfloat16)
    assert out2.shape == (N2, D2)
    assert jnp.allclose(out2, ref2, atol=2e-3, rtol=2e-3), "multi-tile mismatch"

    print("KERNEL_OK")
</pallas_src>

<mosaic_0001>
module attributes {stable_mosaic.version = 11 : i64} {
  func.func @res_layer_kernel(%arg0: i32, %arg1: memref<16x128xf32, #tpu.memory_space<vmem>>, %arg2: memref<128x128xf32, #tpu.memory_space<vmem>>, %arg3: memref<128x128xf32, #tpu.memory_space<vmem>>, %arg4: memref<8x128xf32, #tpu.memory_space<vmem>>, %arg5: memref<16x128xf32, #tpu.memory_space<vmem>>) attributes {dimension_semantics = [#tpu.dimension_semantics<parallel>], iteration_bounds = array<i64: 1>, scalar_prefetch = 0 : i64, scratch_operands = 0 : i64, tpu.core_type = #tpu.core_type<tc>, window_params = [{transform_indices = @transform_0, window_bounds = array<i64: 16, 128>}, {pipeline_mode = #tpu.pipeline_mode<synchronous>, transform_indices = @transform_1, window_bounds = array<i64: 128, 128>}, {pipeline_mode = #tpu.pipeline_mode<synchronous>, transform_indices = @transform_2, window_bounds = array<i64: 128, 128>}, {pipeline_mode = #tpu.pipeline_mode<synchronous>, transform_indices = @transform_3, window_bounds = array<i64: 8, 128>}, {transform_indices = @transform_4, window_bounds = array<i64: 16, 128>}]} {
    %c0 = arith.constant 0 : index
    %c0_0 = arith.constant 0 : index
    %0 = vector.load %arg1[%c0, %c0_0] : memref<16x128xf32, #tpu.memory_space<vmem>>, vector<16x128xf32>
    %c0_1 = arith.constant 0 : index
    %c0_2 = arith.constant 0 : index
    %1 = vector.load %arg4[%c0_1, %c0_2] : memref<8x128xf32, #tpu.memory_space<vmem>>, vector<8x128xf32>
    %2 = vector.extract_strided_slice %1 {offsets = [0, 0], sizes = [1, 128], strides = [1, 1]} : vector<8x128xf32> to vector<1x128xf32>
    %3 = vector.extract_strided_slice %1 {offsets = [1, 0], sizes = [1, 128], strides = [1, 1]} : vector<8x128xf32> to vector<1x128xf32>
    %4 = vector.extract_strided_slice %1 {offsets = [2, 0], sizes = [1, 128], strides = [1, 1]} : vector<8x128xf32> to vector<1x128xf32>
    %5 = vector.extract_strided_slice %1 {offsets = [3, 0], sizes = [1, 128], strides = [1, 1]} : vector<8x128xf32> to vector<1x128xf32>
    %6 = vector.extract_strided_slice %1 {offsets = [4, 0], sizes = [1, 128], strides = [1, 1]} : vector<8x128xf32> to vector<1x128xf32>
    %7 = vector.extract_strided_slice %1 {offsets = [5, 0], sizes = [1, 128], strides = [1, 1]} : vector<8x128xf32> to vector<1x128xf32>
    %8 = tpu.iota {dimensions = array<i32: 1>} : vector<1x128xi32>
    %c32_i32 = arith.constant 32 : i32
    %9 = vector.broadcast %c32_i32 : i32 to vector<1x128xi32>
    %10 = arith.cmpi slt, %8, %9 : vector<1x128xi32>
    %11 = arith.extui %10 : vector<1x128xi1> to vector<1x128xi32>
    %12 = arith.sitofp %11 : vector<1x128xi32> to vector<1x128xf32>
    %c0_3 = arith.constant 0 : index
    %c0_4 = arith.constant 0 : index
    %13 = vector.load %arg2[%c0_3, %c0_4] : memref<128x128xf32, #tpu.memory_space<vmem>>, vector<128x128xf32>
    %cst = arith.constant dense<0.000000e+00> : vector<16x128xf32>
    %14 = tpu.matmul %0, %13, %cst {dimension_numbers = #tpu.dot_dimension_numbers<[1], [0], [0], [1], [0, 0, 1, 1], [], []>} : vector<16x128xf32>, vector<128x128xf32>, vector<16x128xf32> -> vector<16x128xf32>
    %15 = vector.broadcast %2 : vector<1x128xf32> to vector<16x128xf32>
    %16 = arith.addf %14, %15 : vector<16x128xf32>
    %cst_5 = arith.constant dense<0.000000e+00> : vector<16xf32>
    %17 = vector.multi_reduction <add>, %16, %cst_5 [1] : vector<16x128xf32> to vector<16xf32>
    %18 = vector.shape_cast %17 : vector<16xf32> to vector<16x1xf32>
    %cst_6 = arith.constant 3.125000e-02 : f32
    %19 = vector.broadcast %cst_6 : f32 to vector<16x1xf32>
    %20 = arith.mulf %18, %19 : vector<16x1xf32>
    %21 = vector.broadcast %20 : vector<16x1xf32> to vector<16x128xf32>
    %22 = arith.subf %16, %21 : vector<16x128xf32>
    %23 = vector.broadcast %12 : vector<1x128xf32> to vector<16x128xf32>
    %24 = arith.mulf %22, %23 : vector<16x128xf32>
    %25 = arith.mulf %24, %24 : vector<16x128xf32>
    %cst_7 = arith.constant dense<0.000000e+00> : vector<16xf32>
    %26 = vector.multi_reduction <add>, %25, %cst_7 [1] : vector<16x128xf32> to vector<16xf32>
    %27 = vector.shape_cast %26 : vector<16xf32> to vector<16x1xf32>
    %cst_8 = arith.constant 3.125000e-02 : f32
    %28 = vector.broadcast %cst_8 : f32 to vector<16x1xf32>
    %29 = arith.mulf %27, %28 : vector<16x1xf32>
    %cst_9 = arith.constant 9.99999974E-6 : f32
    %30 = vector.broadcast %cst_9 : f32 to vector<16x1xf32>
    %31 = arith.addf %29, %30 : vector<16x1xf32>
    %32 = math.rsqrt %31 : vector<16x1xf32>
    %33 = vector.broadcast %32 : vector<16x1xf32> to vector<16x128xf32>
    %34 = arith.mulf %24, %33 : vector<16x128xf32>
    %35 = vector.broadcast %3 : vector<1x128xf32> to vector<16x128xf32>
    %36 = arith.mulf %34, %35 : vector<16x128xf32>
    %37 = vector.broadcast %4 : vector<1x128xf32> to vector<16x128xf32>
    %38 = arith.addf %36, %37 : vector<16x128xf32>
    %cst_10 = arith.constant 0.000000e+00 : f32
    %39 = vector.broadcast %cst_10 : f32 to vector<16x128xf32>
    %40 = arith.maximumf %38, %39 : vector<16x128xf32>
    %c0_11 = arith.constant 0 : index
    %c0_12 = arith.constant 0 : index
    %41 = vector.load %arg3[%c0_11, %c0_12] : memref<128x128xf32, #tpu.memory_space<vmem>>, vector<128x128xf32>
    %cst_13 = arith.constant dense<0.000000e+00> : vector<16x128xf32>
    %42 = tpu.matmul %40, %41, %cst_13 {dimension_numbers = #tpu.dot_dimension_numbers<[1], [0], [0], [1], [0, 0, 1, 1], [], []>} : vector<16x128xf32>, vector<128x128xf32>, vector<16x128xf32> -> vector<16x128xf32>
    %43 = vector.broadcast %5 : vector<1x128xf32> to vector<16x128xf32>
    %44 = arith.addf %42, %43 : vector<16x128xf32>
    %cst_14 = arith.constant dense<0.000000e+00> : vector<16xf32>
    %45 = vector.multi_reduction <add>, %44, %cst_14 [1] : vector<16x128xf32> to vector<16xf32>
    %46 = vector.shape_cast %45 : vector<16xf32> to vector<16x1xf32>
    %cst_15 = arith.constant 3.125000e-02 : f32
    %47 = vector.broadcast %cst_15 : f32 to vector<16x1xf32>
    %48 = arith.mulf %46, %47 : vector<16x1xf32>
    %49 = vector.broadcast %48 : vector<16x1xf32> to vector<16x128xf32>
    %50 = arith.subf %44, %49 : vector<16x128xf32>
    %51 = vector.broadcast %12 : vector<1x128xf32> to vector<16x128xf32>
    %52 = arith.mulf %50, %51 : vector<16x128xf32>
    %53 = arith.mulf %52, %52 : vector<16x128xf32>
    %cst_16 = arith.constant dense<0.000000e+00> : vector<16xf32>
    %54 = vector.multi_reduction <add>, %53, %cst_16 [1] : vector<16x128xf32> to vector<16xf32>
    %55 = vector.shape_cast %54 : vector<16xf32> to vector<16x1xf32>
    %cst_17 = arith.constant 3.125000e-02 : f32
    %56 = vector.broadcast %cst_17 : f32 to vector<16x1xf32>
    %57 = arith.mulf %55, %56 : vector<16x1xf32>
    %cst_18 = arith.constant 9.99999974E-6 : f32
    %58 = vector.broadcast %cst_18 : f32 to vector<16x1xf32>
    %59 = arith.addf %57, %58 : vector<16x1xf32>
    %60 = math.rsqrt %59 : vector<16x1xf32>
    %61 = vector.broadcast %60 : vector<16x1xf32> to vector<16x128xf32>
    %62 = arith.mulf %52, %61 : vector<16x128xf32>
    %63 = vector.broadcast %6 : vector<1x128xf32> to vector<16x128xf32>
    %64 = arith.mulf %62, %63 : vector<16x128xf32>
    %65 = vector.broadcast %7 : vector<1x128xf32> to vector<16x128xf32>
    %66 = arith.addf %64, %65 : vector<16x128xf32>
    %cst_19 = arith.constant 0.000000e+00 : f32
    %67 = vector.broadcast %cst_19 : f32 to vector<16x128xf32>
    %68 = arith.maximumf %66, %67 : vector<16x128xf32>
    %69 = arith.addf %68, %0 : vector<16x128xf32>
    %c0_20 = arith.constant 0 : index
    %c0_21 = arith.constant 0 : index
    %70 = vector.load %arg5[%c0_20, %c0_21] : memref<16x128xf32, #tpu.memory_space<vmem>>, vector<16x128xf32>
    tpu.vector_store %arg5[%c0_20, %c0_21], %69 {strides = array<i32>} : memref<16x128xf32, #tpu.memory_space<vmem>>, vector<16x128xf32>,
    return
  }
  func.func @transform_0(%arg0: i32) -> (i32, i32) {
    %c0_i32 = arith.constant 0 : i32
    %c0_i32_0 = arith.constant 0 : i32
    return %arg0, %c0_i32 : i32, i32
  }
  func.func @transform_1(%arg0: i32) -> (i32, i32) {
    %c0_i32 = arith.constant 0 : i32
    %c0_i32_0 = arith.constant 0 : i32
    %c0_i32_1 = arith.constant 0 : i32
    return %c0_i32, %c0_i32_0 : i32, i32
  }
  func.func @transform_2(%arg0: i32) -> (i32, i32) {
    %c0_i32 = arith.constant 0 : i32
    %c0_i32_0 = arith.constant 0 : i32
    %c0_i32_1 = arith.constant 0 : i32
    return %c0_i32, %c0_i32_0 : i32, i32
  }
  func.func @transform_3(%arg0: i32) -> (i32, i32) {
    %c0_i32 = arith.constant 0 : i32
    %c0_i32_0 = arith.constant 0 : i32
    %c0_i32_1 = arith.constant 0 : i32
    return %c0_i32, %c0_i32_0 : i32, i32
  }
  func.func @transform_4(%arg0: i32) -> (i32, i32) {
    %c0_i32 = arith.constant 0 : i32
    %c0_i32_0 = arith.constant 0 : i32
    return %arg0, %c0_i32 : i32, i32
  }
}

</mosaic_0001>

<llo_original>
// kernel: tpu_custom_call.1
$region0: #{tpu_custom_call.1}
  #allocation0 [shape = 'u32[]', space=smem, size = 0x4, offset = 0x4, fixed_abs, tag = 'smem constant byte address 0x4 - core index']
  #allocation1 [shape = 'u32[144,128]{1,0:T(1,128)}', space=vmem, size = 0x12000, scoped, tag = 'internal scratch']
  %s0 = inlined_call_operand.hbm [shape: f32[16,128], index: 0, kind: input, shape index: {}]
  %s1 = inlined_call_operand.hbm [shape: f32[128,128], index: 1, kind: input, shape index: {}]
  %s2 = inlined_call_operand.hbm [shape: f32[128,128], index: 2, kind: input, shape index: {}]
  %s3 = inlined_call_operand.hbm [shape: f32[8,128], index: 3, kind: input, shape index: {}]
  %s4 = inlined_call_operand.hbm [shape: f32[16,128], index: 4, kind: output, shape index: {}]
  %s5 = sld [smem:[#allocation0]]
  $region42: #{tpu_custom_call.1} parent=0
    _
  %s7 = ssub.s32 1, %s5
  %s8 = scalar_select 0, %s7, %s5
  $region1: #{tpu_custom_call.1} parent=0
    #allocation2 [shape = 'u8[8192]{0}', space=vmem, size = 0x2000, scoped, tag = 'input window, operand 0, single buffered']
    #allocation3 [shape = 's32[1]{0}', space=sflag, size = 0x4, scoped, tag = 'scoped memory for tpu_custom_call.1']
    #allocation4 [shape = 's32[1]{0}', space=sflag, size = 0x4, scoped, tag = 'scoped memory for tpu_custom_call.1']
    #allocation5 [shape = 'u8[65536]{0}', space=vmem, size = 0x10000, scoped, tag = 'input window, operand 1, single buffered']
    #allocation6 [shape = 's32[1]{0}', space=sflag, size = 0x4, scoped, tag = 'scoped memory for tpu_custom_call.1']
    #allocation7 [shape = 'u8[65536]{0}', space=vmem, size = 0x10000, scoped, tag = 'input window, operand 2, single buffered']
    #allocation8 [shape = 'u8[4096]{0}', space=vmem, size = 0x1000, scoped, tag = 'input window, operand 3, single buffered']
    #allocation9 [shape = 's32[1]{0}', space=sflag, size = 0x4, scoped, tag = 'scoped memory for tpu_custom_call.1']
    #allocation10 [shape = 'u8[8192]{0}', space=vmem, size = 0x2000, scoped, tag = 'output window, operand 0, single buffered']
    %9 = vsyncpa [#allocation3], 0
    %10 = vsyncpa [#allocation6], 0
    %11 = vsyncpa [#allocation9], 0
    %12 = vsyncpa [#allocation4], 0
    // Predicated region
    $region2: #{tpu_custom_call.1} parent=1 // pred_check
      _
    $region3: #{tpu_custom_call.1} parent=1 // pred_check_branch
      %14 = sbr.rel (0) target = $region5
    $region4: #{tpu_custom_call.1} parent=1 // pred_region
      %s16 = ssub.s32 256, 256
      %17 = vsyncadd [#allocation3], %s16
      %s18 = sshll.u32 [#allocation2], 4
      %s19 = int_to_ptr.vmem [resolvable:$true] %s18
      %24 = dma.hbm_to_vmem [thread:$0]  %s0, 256, %s19, [#allocation3], 128, 128, 8
    $region5: #{tpu_custom_call.1} parent=1 // pred_fallthru
      _
    // Predicated region
    $region6: #{tpu_custom_call.1} parent=1 // pred_check
      _
    $region7: #{tpu_custom_call.1} parent=1 // pred_check_branch
      %26 = sbr.rel (0) target = $region9
    $region8: #{tpu_custom_call.1} parent=1 // pred_region
      %s28 = ssub.s32 2048, 2048
      %29 = vsyncadd [#allocation6], %s28
      %s30 = sshll.u32 [#allocation5], 4
      %s31 = int_to_ptr.vmem [resolvable:$true] %s30
      %36 = dma.hbm_to_vmem [thread:$0]  %s1, 2048, %s31, [#allocation6], 128, 128, 8
    $region9: #{tpu_custom_call.1} parent=1 // pred_fallthru
      _
    // Predicated region
    $region10: #{tpu_custom_call.1} parent=1 // pred_check
      _
    $region11: #{tpu_custom_call.1} parent=1 // pred_check_branch
      %38 = sbr.rel (0) target = $region13
    $region12: #{tpu_custom_call.1} parent=1 // pred_region
      %s40 = ssub.s32 2048, 2048
      %41 = vsyncadd [#allocation6], %s40
      %s42 = sshll.u32 [#allocation7], 4
      %s43 = int_to_ptr.vmem [resolvable:$true] %s42
      %48 = dma.hbm_to_vmem [thread:$0]  %s2, 2048, %s43, [#allocation6], 128, 128, 8
    $region13: #{tpu_custom_call.1} parent=1 // pred_fallthru
      _
    // Predicated region
    $region14: #{tpu_custom_call.1} parent=1 // pred_check
      _
    $region15: #{tpu_custom_call.1} parent=1 // pred_check_branch
      %50 = sbr.rel (0) target = $region17
    $region16: #{tpu_custom_call.1} parent=1 // pred_region
      %s52 = ssub.s32 128, 128
      %53 = vsyncadd [#allocation9], %s52
      %s55 = sshll.u32 [#allocation8], 4
      %s56 = int_to_ptr.vmem [resolvable:$true] %s55
      %58 = dma.hbm_to_vmem [thread:$0]  %s3, 128, %s56, [#allocation9]
    $region17: #{tpu_custom_call.1} parent=1 // pred_fallthru
      _
    // Predicated region
    $region18: #{tpu_custom_call.1} parent=1 // pred_check
      _
    $region19: #{tpu_custom_call.1} parent=1 // pred_check_branch
      %60 = sbr.rel (0) target = $region21
    $region20: #{tpu_custom_call.1} parent=1 // pred_region
      %61 = dma.done [#allocation3], 256
    $region21: #{tpu_custom_call.1} parent=1 // pred_fallthru
      _
    // Predicated region
    $region22: #{tpu_custom_call.1} parent=1 // pred_check
      _
    $region23: #{tpu_custom_call.1} parent=1 // pred_check_branch
      %63 = sbr.rel (0) target = $region25
    $region24: #{tpu_custom_call.1} parent=1 // pred_region
      %64 = dma.done [#allocation6], 2048
    $region25: #{tpu_custom_call.1} parent=1 // pred_fallthru
      _
    // Predicated region
    $region26: #{tpu_custom_call.1} parent=1 // pred_check
      _
    $region27: #{tpu_custom_call.1} parent=1 // pred_check_branch
      %66 = sbr.rel (0) target = $region29
    $region28: #{tpu_custom_call.1} parent=1 // pred_region
      %67 = dma.done [#allocation6], 2048
    $region29: #{tpu_custom_call.1} parent=1 // pred_fallthru
      _
    // Predicated region
    $region30: #{tpu_custom_call.1} parent=1 // pred_check
      _
    $region31: #{tpu_custom_call.1} parent=1 // pred_check_branch
      %69 = sbr.rel (0) target = $region33
    $region32: #{tpu_custom_call.1} parent=1 // pred_region
      %70 = dma.done [#allocation9], 128
    $region33: #{tpu_custom_call.1} parent=1 // pred_fallthru
      _
    %v71 = vld [vmem:[#allocation2] sm:$0xff]
    %v72 = vld [vmem:[#allocation2 + $0x8] sm:$0xff]
    %v73 = vld [vmem:[#allocation8] sm:$0xff]
    %v74 = vlaneseq
    %v75 = vand.u32 %v74, 127
    %vm76 = vcmp.lt.s32.totalorder %v75, 32
    %v77 = vsel %vm76, 1, 0
    %v78 = vcvt.s32.f32 %v77
    %v79 = vld [vmem:[#allocation5] sm:$0xff]
    %v80 = vld [vmem:[#allocation5 + $0x8] sm:$0xff]
    %v81 = vld [vmem:[#allocation5 + $0x10] sm:$0xff]
    %v82 = vld [vmem:[#allocation5 + $0x18] sm:$0xff]
    %v83 = vld [vmem:[#allocation5 + $0x20] sm:$0xff]
    %v84 = vld [vmem:[#allocation5 + $0x28] sm:$0xff]
    %v85 = vld [vmem:[#allocation5 + $0x30] sm:$0xff]
    %v86 = vld [vmem:[#allocation5 + $0x38] sm:$0xff]
    %v87 = vld [vmem:[#allocation5 + $0x40] sm:$0xff]
    %v88 = vld [vmem:[#allocation5 + $0x48] sm:$0xff]
    %v89 = vld [vmem:[#allocation5 + $0x50] sm:$0xff]
    %v90 = vld [vmem:[#allocation5 + $0x58] sm:$0xff]
    %v91 = vld [vmem:[#allocation5 + $0x60] sm:$0xff]
    %v92 = vld [vmem:[#allocation5 + $0x68] sm:$0xff]
    %v93 = vld [vmem:[#allocation5 + $0x70] sm:$0xff]
    %v94 = vld [vmem:[#allocation5 + $0x78] sm:$0xff]
    %v95 = vlaneseq
    %v96 = vshrl.u32 %v95, 7
    %v97 = vsub.s32 0, %v96
    %v98 = vrot.slane %v73, %v97
    %99 = vmatprep.subr.mxu0 0.0
    %100 = vmatpush1.msra.mxu0 %v94
    %101 = vmatprep.subr.mxu0 0.0
    %102 = vmatpush1.msra.mxu0 %v93
    %103 = vmatprep.subr.mxu0 0.0
    %104 = vmatpush1.msra.mxu0 %v92
    %105 = vmatprep.subr.mxu0 0.0
    %106 = vmatpush1.msra.mxu0 %v91
    %107 = vmatprep.subr.mxu0 0.0
    %108 = vmatpush1.msra.mxu0 %v90
    %109 = vmatprep.subr.mxu0 0.0
    %110 = vmatpush1.msra.mxu0 %v89
    %111 = vmatprep.subr.mxu0 0.0
    %112 = vmatpush1.msra.mxu0 %v88
    %113 = vmatprep.subr.mxu0 0.0
    %114 = vmatpush1.msra.mxu0 %v87
    %115 = vmatprep.subr.mxu0 0.0
    %116 = vmatpush1.msra.mxu0 %v86
    %117 = vmatprep.subr.mxu0 0.0
    %118 = vmatpush1.msra.mxu0 %v85
    %119 = vmatprep.subr.mxu0 0.0
    %120 = vmatpush1.msra.mxu0 %v84
    %121 = vmatprep.subr.mxu0 0.0
    %122 = vmatpush1.msra.mxu0 %v83
    %123 = vmatprep.subr.mxu0 0.0
    %124 = vmatpush1.msra.mxu0 %v82
    %125 = vmatprep.subr.mxu0 0.0
    %126 = vmatpush1.msra.mxu0 %v81
    %127 = vmatprep.subr.mxu0 0.0
    %128 = vmatpush1.msra.mxu0 %v80
    %129 = vmatprep.subr.mxu0 0.0
    %130 = vmatpush1.msra.mxu0 %v79
    %131 = vmatprep.subr.mxu0 0.0
    %132 = vmatpush2.msra.mxu0 0.0
    %133 = vmatprep.subr.mxu0 0.0
    %134 = vmatpush2.msra.mxu0 0.0
    %135 = vmatprep.subr.mxu0 0.0
    %136 = vmatpush2.msra.mxu0 0.0
    %137 = vmatprep.subr.mxu0 0.0
    %138 = vmatpush2.msra.mxu0 0.0
    %139 = vmatprep.subr.mxu0 0.0
    %140 = vmatpush2.msra.mxu0 0.0
    %141 = vmatprep.subr.mxu0 0.0
    %142 = vmatpush2.msra.mxu0 0.0
    %143 = vmatprep.subr.mxu0 0.0
    %144 = vmatpush2.msra.mxu0 0.0
    %145 = vmatprep.subr.mxu0 0.0
    %146 = vmatpush2.msra.mxu0 0.0
    %147 = vmatprep.subr.mxu0 0.0
    %148 = vmatpush2.msra.mxu0 0.0
    %149 = vmatprep.subr.mxu0 0.0
    %150 = vmatpush2.msra.mxu0 0.0
    %151 = vmatprep.subr.mxu0 0.0
    %152 = vmatpush2.msra.mxu0 0.0
    %153 = vmatprep.subr.mxu0 0.0
    %154 = vmatpush2.msra.mxu0 0.0
    %155 = vmatprep.subr.mxu0 0.0
    %156 = vmatpush2.msra.mxu0 0.0
    %157 = vmatprep.subr.mxu0 0.0
    %158 = vmatpush2.msra.mxu0 0.0
    %159 = vmatprep.subr.mxu0 0.0
    %160 = vmatpush2.msra.mxu0 0.0
    %161 = vmatprep.subr.mxu0 0.0
    %162 = vmatpush2.msra.mxu0 0.0
    %163 = vmatprep.mubr.f32.mxu0 0.0
    %164 = vmatmul.mubr.f32.gmra.mxu0 %v71
    %v165 = vpop.f32.mrf.mxu0
    %v166 = vadd.f32 %v98, %v165
    %v167 = vpop.f32.mrf.mxu0
    %168 = vmatprep.mubr.f32.mxu0 0.0
    %169 = vmatmul.mubr.f32.gmra.mxu0 %v72
    %v170 = vpop.f32.mrf.mxu0
    %v171 = vadd.f32 %v98, %v170
    %v172 = vpop.f32.mrf.mxu0
    %173 = vdwg.mxu0
    %174 = vadd.xlane.f32.xlu0 %v166
    %v175 = vpop.xlane.xlu0 %174
    %176 = vadd.xlane.f32.xlu0 %v171
    %v177 = vpop.xlane.xlu0 %176
    %v178 = vmul.f32 %v175, 0.03125
    %v179 = vmul.f32 %v177, 0.03125
    %v180 = vsub.f32 %v166, %v178
    %v181 = vsub.f32 %v171, %v179
    %v182 = vmul.f32 %v180, %v78
    %v183 = vmul.f32 %v181, %v78
    %v184 = vmul.f32 %v182, %v182
    %v185 = vmul.f32 %v183, %v183
    %186 = vadd.xlane.f32.xlu0 %v184
    %v187 = vpop.xlane.xlu0 %186
    %188 = vadd.xlane.f32.xlu0 %v185
    %v189 = vpop.xlane.xlu0 %188
    %v190 = vmul.f32 %v187, 0.03125
    %v191 = vmul.f32 %v189, 0.03125
    %v192 = vadd.f32 %v190, 1e-05
    %v193 = vadd.f32 %v191, 1e-05
    %v194 = vrsqrt.pop %v192
    %v195 = vrsqrt.pop %v193
    %v196 = vmul.f32 %v182, %v194
    %v197 = vmul.f32 %v183, %v195
    %v198 = vlaneseq
    %v199 = vshrl.u32 %v198, 7
    %v200 = vsub.s32 1, %v199
    %v201 = vrot.slane %v73, %v200
    %v202 = vmul.f32 %v196, %v201
    %v203 = vmul.f32 %v197, %v201
    %v204 = vlaneseq
    %v205 = vshrl.u32 %v204, 7
    %v206 = vsub.s32 2, %v205
    %v207 = vrot.slane %v73, %v206
    %v208 = vadd.f32 %v202, %v207
    %v209 = vadd.f32 %v203, %v207
    %v210 = vmax.f32 %v208, 0.0
    %v211 = vmax.f32 %v209, 0.0
    %v212 = vld [vmem:[#allocation7] sm:$0xff]
    %v213 = vld [vmem:[#allocation7 + $0x8] sm:$0xff]
    %v214 = vld [vmem:[#allocation7 + $0x10] sm:$0xff]
    %v215 = vld [vmem:[#allocation7 + $0x18] sm:$0xff]
    %v216 = vld [vmem:[#allocation7 + $0x20] sm:$0xff]
    %v217 = vld [vmem:[#allocation7 + $0x28] sm:$0xff]
    %v218 = vld [vmem:[#allocation7 + $0x30] sm:$0xff]
    %v219 = vld [vmem:[#allocation7 + $0x38] sm:$0xff]
    %v220 = vld [vmem:[#allocation7 + $0x40] sm:$0xff]
    %v221 = vld [vmem:[#allocation7 + $0x48] sm:$0xff]
    %v222 = vld [vmem:[#allocation7 + $0x50] sm:$0xff]
    %v223 = vld [vmem:[#allocation7 + $0x58] sm:$0xff]
    %v224 = vld [vmem:[#allocation7 + $0x60] sm:$0xff]
    %v225 = vld [vmem:[#allocation7 + $0x68] sm:$0xff]
    %v226 = vld [vmem:[#allocation7 + $0x70] sm:$0xff]
    %v227 = vld [vmem:[#allocation7 + $0x78] sm:$0xff]
    %v228 = vlaneseq
    %v229 = vshrl.u32 %v228, 7
    %v230 = vsub.s32 3, %v229
    %v231 = vrot.slane %v73, %v230
    %232 = vmatprep.subr.mxu0 0.0
    %233 = vmatpush1.msra.mxu0 %v227
    %234 = vmatprep.subr.mxu0 0.0
    %235 = vmatpush1.msra.mxu0 %v226
    %236 = vmatprep.subr.mxu0 0.0
    %237 = vmatpush1.msra.mxu0 %v225
    %238 = vmatprep.subr.mxu0 0.0
    %239 = vmatpush1.msra.mxu0 %v224
    %240 = vmatprep.subr.mxu0 0.0
    %241 = vmatpush1.msra.mxu0 %v223
    %242 = vmatprep.subr.mxu0 0.0
    %243 = vmatpush1.msra.mxu0 %v222
    %244 = vmatprep.subr.mxu0 0.0
    %245 = vmatpush1.msra.mxu0 %v221
    %246 = vmatprep.subr.mxu0 0.0
    %247 = vmatpush1.msra.mxu0 %v220
    %248 = vmatprep.subr.mxu0 0.0
    %249 = vmatpush1.msra.mxu0 %v219
    %250 = vmatprep.subr.mxu0 0.0
    %251 = vmatpush1.msra.mxu0 %v218
    %252 = vmatprep.subr.mxu0 0.0
    %253 = vmatpush1.msra.mxu0 %v217
    %254 = vmatprep.subr.mxu0 0.0
    %255 = vmatpush1.msra.mxu0 %v216
    %256 = vmatprep.subr.mxu0 0.0
    %257 = vmatpush1.msra.mxu0 %v215
    %258 = vmatprep.subr.mxu0 0.0
    %259 = vmatpush1.msra.mxu0 %v214
    %260 = vmatprep.subr.mxu0 0.0
    %261 = vmatpush1.msra.mxu0 %v213
    %262 = vmatprep.subr.mxu0 0.0
    %263 = vmatpush1.msra.mxu0 %v212
    %264 = vmatprep.subr.mxu0 0.0
    %265 = vmatpush2.msra.mxu0 0.0
    %266 = vmatprep.subr.mxu0 0.0
    %267 = vmatpush2.msra.mxu0 0.0
    %268 = vmatprep.subr.mxu0 0.0
    %269 = vmatpush2.msra.mxu0 0.0
    %270 = vmatprep.subr.mxu0 0.0
    %271 = vmatpush2.msra.mxu0 0.0
    %272 = vmatprep.subr.mxu0 0.0
    %273 = vmatpush2.msra.mxu0 0.0
    %274 = vmatprep.subr.mxu0 0.0
    %275 = vmatpush2.msra.mxu0 0.0
    %276 = vmatprep.subr.mxu0 0.0
    %277 = vmatpush2.msra.mxu0 0.0
    %278 = vmatprep.subr.mxu0 0.0
    %279 = vmatpush2.msra.mxu0 0.0
    %280 = vmatprep.subr.mxu0 0.0
    %281 = vmatpush2.msra.mxu0 0.0
    %282 = vmatprep.subr.mxu0 0.0
    %283 = vmatpush2.msra.mxu0 0.0
    %284 = vmatprep.subr.mxu0 0.0
    %285 = vmatpush2.msra.mxu0 0.0
    %286 = vmatprep.subr.mxu0 0.0
    %287 = vmatpush2.msra.mxu0 0.0
    %288 = vmatprep.subr.mxu0 0.0
    %289 = vmatpush2.msra.mxu0 0.0
    %290 = vmatprep.subr.mxu0 0.0
    %291 = vmatpush2.msra.mxu0 0.0
    %292 = vmatprep.subr.mxu0 0.0
    %293 = vmatpush2.msra.mxu0 0.0
    %294 = vmatprep.subr.mxu0 0.0
    %295 = vmatpush2.msra.mxu0 0.0
    %296 = vmatprep.mubr.f32.mxu0 0.0
    %297 = vmatmul.mubr.f32.gmra.mxu0 %v210
    %v298 = vpop.f32.mrf.mxu0
    %v299 = vadd.f32 %v231, %v298
    %v300 = vpop.f32.mrf.mxu0
    %301 = vmatprep.mubr.f32.mxu0 0.0
    %302 = vmatmul.mubr.f32.gmra.mxu0 %v211
    %v303 = vpop.f32.mrf.mxu0
    %v304 = vadd.f32 %v231, %v303
    %v305 = vpop.f32.mrf.mxu0
    %306 = vdwg.mxu0
    %307 = vadd.xlane.f32.xlu0 %v299
    %v308 = vpop.xlane.xlu0 %307
    %309 = vadd.xlane.f32.xlu0 %v304
    %v310 = vpop.xlane.xlu0 %309
    %v311 = vmul.f32 %v308, 0.03125
    %v312 = vmul.f32 %v310, 0.03125
    %v313 = vsub.f32 %v299, %v311
    %v314 = vsub.f32 %v304, %v312
    %v315 = vmul.f32 %v313, %v78
    %v316 = vmul.f32 %v314, %v78
    %v317 = vmul.f32 %v315, %v315
    %v318 = vmul.f32 %v316, %v316
    %319 = vadd.xlane.f32.xlu0 %v317
    %v320 = vpop.xlane.xlu0 %319
    %321 = vadd.xlane.f32.xlu0 %v318
    %v322 = vpop.xlane.xlu0 %321
    %v323 = vmul.f32 %v320, 0.03125
    %v324 = vmul.f32 %v322, 0.03125
    %v325 = vadd.f32 %v323, 1e-05
    %v326 = vadd.f32 %v324, 1e-05
    %v327 = vrsqrt.pop %v325
    %v328 = vrsqrt.pop %v326
    %v329 = vmul.f32 %v315, %v327
    %v330 = vmul.f32 %v316, %v328
    %v331 = vlaneseq
    %v332 = vshrl.u32 %v331, 7
    %v333 = vsub.s32 4, %v332
    %v334 = vrot.slane %v73, %v333
    %v335 = vmul.f32 %v329, %v334
    %v336 = vmul.f32 %v330, %v334
    %v337 = vlaneseq
    %v338 = vshrl.u32 %v337, 7
    %v339 = vsub.s32 5, %v338
    %v340 = vrot.slane %v73, %v339
    %v341 = vadd.f32 %v335, %v340
    %v342 = vadd.f32 %v336, %v340
    %v343 = vmax.f32 %v341, 0.0
    %v344 = vmax.f32 %v342, 0.0
    %v345 = vadd.f32 %v343, %v71
    %v346 = vadd.f32 %v344, %v72
    %347 = vst [vmem:[#allocation10] sm:$0xff] %v345
    %348 = vst [vmem:[#allocation10 + $0x8] sm:$0xff] %v346
    // Predicated region
    $region34: #{tpu_custom_call.1} parent=1 // pred_check
      _
    $region35: #{tpu_custom_call.1} parent=1 // pred_check_branch
      %350 = sbr.rel (0) target = $region37
    $region36: #{tpu_custom_call.1} parent=1 // pred_region
      %s352 = ssub.s32 256, 256
      %353 = vsyncadd [#allocation4], %s352
      %s354 = sshll.u32 [#allocation10], 4
      %s355 = int_to_ptr.vmem [resolvable:$true] %s354
      %360 = dma.vmem_to_hbm [thread:$0]  %s355, 256, %s4, [#allocation4], 128, 128, 8
    $region37: #{tpu_custom_call.1} parent=1 // pred_fallthru
      _
    // Predicated region
    $region38: #{tpu_custom_call.1} parent=1 // pred_check
      _
    $region39: #{tpu_custom_call.1} parent=1 // pred_check_branch
      %362 = sbr.rel (0) target = $region41
    $region40: #{tpu_custom_call.1} parent=1 // pred_region
      %363 = dma.done [#allocation4], 256
    $region41: #{tpu_custom_call.1} parent=1 // pred_fallthru
      _
    %364 = vsyncpa [#allocation3], 1
    %365 = vsyncpa [#allocation6], 1
    %366 = vsyncpa [#allocation9], 1
    %367 = vsyncpa [#allocation4], 1

</llo_original>
